<compile_context>
chip_gen: v7x
topology: tpu7x:2x2x1
jax: 0.10.0
libtpu: 0.0.40
codegen_flags: <defaults>
</compile_context>

<pallas_src>
import jax
import jax.numpy as jnp
from jax.experimental import pallas as pl
from jax.experimental.pallas import tpu as pltpu

_LANES = 128
_SUBLANES = 8
_TARGET_TILE_BYTES = 1 << 20  # ~1 MiB per VMEM buffer per tile


def _copy_kernel(x_ref, o_ref):
    # Identity on the VMEM tile.
    o_ref[...] = x_ref[...]


def _tiled_copy_2d(x2d):
    """Identity copy of a 2-D array through VMEM, tiled along dim 0."""
    rows, cols = x2d.shape
    itemsize = jnp.dtype(x2d.dtype).itemsize

    # Rows per tile: a multiple of 8 sublanes, ~1 MiB per VMEM buffer.
    budget_rows = max(_SUBLANES, _TARGET_TILE_BYTES // max(1, cols * itemsize))
    budget_rows = max(_SUBLANES, (budget_rows // _SUBLANES) * _SUBLANES)
    # If the whole array fits in one tile, use the exact array dims as the
    # block (always legal, no masked writes, grid of 1).  Otherwise use a
    # sublane-aligned tile; Pallas masks the ragged last block itself.
    tile_rows = rows if budget_rows >= rows else budget_rows

    grid = (pl.cdiv(rows, tile_rows),)
    return pl.pallas_call(
        _copy_kernel,
        grid=grid,
        in_specs=[pl.BlockSpec((tile_rows, cols), lambda i: (i, 0))],
        out_specs=pl.BlockSpec((tile_rows, cols), lambda i: (i, 0)),
        out_shape=jax.ShapeDtypeStruct((rows, cols), x2d.dtype),
        compiler_params=pltpu.CompilerParams(
            dimension_semantics=("parallel",)
        ),
    )(x2d)


def _vmem_copy(x):
    """Identity copy of `x` into a fresh buffer via a Pallas VMEM kernel."""
    n = x.size
    if n == 0:
        return x

    if n % _LANES == 0:
        # Lane-dense view: every store is a full, unmasked 128-lane `vst`.
        x2d = x.reshape(n // _LANES, _LANES)
    elif x.ndim >= 2:
        # Keep the natural trailing dim; block width == full array width.
        x2d = x.reshape(-1, x.shape[-1])
    else:
        x2d = x.reshape(1, n)

    return _tiled_copy_2d(x2d).reshape(x.shape)


def segmentation_stressors_forward(img, mask, *, materialize_copy=True):
    """Pallas equivalent of segmentation_stressors.forward(img, mask).

    The module is a pure pass-through.  `materialize_copy=False` is the
    zero-cost identity (the truly optimal path: no HBM read or write at all).
    `materialize_copy=True` (default, so the Pallas kernel is exercised)
    streams each tensor through VMEM into a fresh output buffer.
    """
    if not materialize_copy:
        return img, mask
    return _vmem_copy(img), _vmem_copy(mask)


if __name__ == "__main__":
    key = jax.random.PRNGKey(0)
    k_img, k_mask = jax.random.split(key)

    # Small, module-consistent shapes: batch=2, channels=4, spatial=16.
    img = jax.random.normal(k_img, (2, 4, 16, 16), dtype=jnp.float32)
    mask = jax.random.randint(
        k_mask, (2, 16, 16), minval=0, maxval=4, dtype=jnp.int32
    )

    out_img, out_mask = segmentation_stressors_forward(img, mask)
    jax.block_until_ready((out_img, out_mask))

    assert out_img.shape == img.shape and out_img.dtype == img.dtype
    assert out_mask.shape == mask.shape and out_mask.dtype == mask.dtype
    assert bool(jnp.all(out_img == img)) and bool(jnp.all(out_mask == mask))

    # Non-128-multiple fallback path exercised too.
    odd = jax.random.normal(key, (3, 5, 7), dtype=jnp.float32)
    odd_out = _vmem_copy(odd)
    jax.block_until_ready(odd_out)
    assert odd_out.shape == odd.shape and bool(jnp.all(odd_out == odd))

    # Zero-cost pass-through path (the optimal implementation) also checked.
    pi, pm = segmentation_stressors_forward(img, mask, materialize_copy=False)
    assert pi is img and pm is mask

    print("KERNEL_OK")
</pallas_src>

<mosaic_0001>
module attributes {stable_mosaic.version = 11 : i64} {
  func.func @_copy_kernel(%arg0: i32, %arg1: memref<16x128xf32, #tpu.memory_space<vmem>>, %arg2: memref<16x128xf32, #tpu.memory_space<vmem>>) attributes {dimension_semantics = [#tpu.dimension_semantics<parallel>], iteration_bounds = array<i64: 1>, scalar_prefetch = 0 : i64, scratch_operands = 0 : i64, tpu.core_type = #tpu.core_type<tc>, window_params = [{transform_indices = @transform_0, window_bounds = array<i64: 16, 128>}, {transform_indices = @transform_1, window_bounds = array<i64: 16, 128>}]} {
    %c0 = arith.constant 0 : index
    %c0_0 = arith.constant 0 : index
    %0 = vector.load %arg1[%c0, %c0_0] : memref<16x128xf32, #tpu.memory_space<vmem>>, vector<16x128xf32>
    %c0_1 = arith.constant 0 : index
    %c0_2 = arith.constant 0 : index
    %1 = vector.load %arg2[%c0_1, %c0_2] : memref<16x128xf32, #tpu.memory_space<vmem>>, vector<16x128xf32>
    tpu.vector_store %arg2[%c0_1, %c0_2], %0 {strides = array<i32>} : memref<16x128xf32, #tpu.memory_space<vmem>>, vector<16x128xf32>,
    return
  }
  func.func @transform_0(%arg0: i32) -> (i32, i32) {
    %c0_i32 = arith.constant 0 : i32
    %c0_i32_0 = arith.constant 0 : i32
    return %arg0, %c0_i32 : i32, i32
  }
  func.func @transform_1(%arg0: i32) -> (i32, i32) {
    %c0_i32 = arith.constant 0 : i32
    %c0_i32_0 = arith.constant 0 : i32
    return %arg0, %c0_i32 : i32, i32
  }
}

</mosaic_0001>

<llo_original>
// kernel: tpu_custom_call.1
$region0: #{tpu_custom_call.1}
  #allocation0 [shape = 'u32[]', space=smem, size = 0x4, offset = 0x4, fixed_abs, tag = 'smem constant byte address 0x4 - core index']
  #allocation1 [shape = 'u32[144,128]{1,0:T(1,128)}', space=vmem, size = 0x12000, scoped, tag = 'internal scratch']
  %s0 = inlined_call_operand.hbm [shape: f32[16,128], index: 0, kind: input, shape index: {}]
  %s1 = inlined_call_operand.hbm [shape: f32[16,128], index: 1, kind: output, shape index: {}]
  %s2 = sld [smem:[#allocation0]]
  $region18: #{tpu_custom_call.1} parent=0
    _
  %s4 = ssub.s32 1, %s2
  %s5 = scalar_select 0, %s4, %s2
  $region1: #{tpu_custom_call.1} parent=0
    #allocation2 [shape = 'u8[8192]{0}', space=vmem, size = 0x2000, scoped, tag = 'input window, operand 0, single buffered']
    #allocation3 [shape = 's32[1]{0}', space=sflag, size = 0x4, scoped, tag = 'scoped memory for tpu_custom_call.1']
    #allocation4 [shape = 's32[1]{0}', space=sflag, size = 0x4, scoped, tag = 'scoped memory for tpu_custom_call.1']
    #allocation5 [shape = 'u8[8192]{0}', space=vmem, size = 0x2000, scoped, tag = 'output window, operand 0, single buffered']
    %6 = vsyncpa [#allocation3], 0
    %7 = vsyncpa [#allocation4], 0
    // Predicated region
    $region2: #{tpu_custom_call.1} parent=1 // pred_check
      _
    $region3: #{tpu_custom_call.1} parent=1 // pred_check_branch
      %9 = sbr.rel (0) target = $region5
    $region4: #{tpu_custom_call.1} parent=1 // pred_region
      %s11 = ssub.s32 256, 256
      %12 = vsyncadd [#allocation3], %s11
      %s13 = sshll.u32 [#allocation2], 4
      %s14 = int_to_ptr.vmem [resolvable:$true] %s13
      %19 = dma.hbm_to_vmem [thread:$0]  %s0, 256, %s14, [#allocation3], 128, 128, 8
    $region5: #{tpu_custom_call.1} parent=1 // pred_fallthru
      _
    // Predicated region
    $region6: #{tpu_custom_call.1} parent=1 // pred_check
      _
    $region7: #{tpu_custom_call.1} parent=1 // pred_check_branch
      %21 = sbr.rel (0) target = $region9
    $region8: #{tpu_custom_call.1} parent=1 // pred_region
      %22 = dma.done [#allocation3], 256
    $region9: #{tpu_custom_call.1} parent=1 // pred_fallthru
      _
    %v23 = vld [vmem:[#allocation2] sm:$0xff]
    %v24 = vld [vmem:[#allocation2 + $0x8] sm:$0xff]
    %25 = vst [vmem:[#allocation5] sm:$0xff] %v23
    %26 = vst [vmem:[#allocation5 + $0x8] sm:$0xff] %v24
    // Predicated region
    $region10: #{tpu_custom_call.1} parent=1 // pred_check
      _
    $region11: #{tpu_custom_call.1} parent=1 // pred_check_branch
      %28 = sbr.rel (0) target = $region13
    $region12: #{tpu_custom_call.1} parent=1 // pred_region
      %s30 = ssub.s32 256, 256
      %31 = vsyncadd [#allocation4], %s30
      %s32 = sshll.u32 [#allocation5], 4
      %s33 = int_to_ptr.vmem [resolvable:$true] %s32
      %38 = dma.vmem_to_hbm [thread:$0]  %s33, 256, %s1, [#allocation4], 128, 128, 8
    $region13: #{tpu_custom_call.1} parent=1 // pred_fallthru
      _
    // Predicated region
    $region14: #{tpu_custom_call.1} parent=1 // pred_check
      _
    $region15: #{tpu_custom_call.1} parent=1 // pred_check_branch
      %40 = sbr.rel (0) target = $region17
    $region16: #{tpu_custom_call.1} parent=1 // pred_region
      %41 = dma.done [#allocation4], 256
    $region17: #{tpu_custom_call.1} parent=1 // pred_fallthru
      _
    %42 = vsyncpa [#allocation3], 1
    %43 = vsyncpa [#allocation4], 1

</llo_original>
